<compile_context>
chip_gen: v7x
topology: tpu7x:2x2x1
jax: 0.10.0
libtpu: 0.0.40
codegen_flags: <defaults>
</compile_context>

<pallas_src>
import functools

import jax
import jax.numpy as jnp
from jax.experimental import pallas as pl
from jax.experimental.pallas import tpu as pltpu


_LANES = 128
_MAX_LANE_WIDTH = 1024              # widest lane-dense view for the flat path
_TRAIN_BLOCK_BYTES = 1 << 20        # ~1 MiB blocks on the training path
_STEP_BLOCK_BYTES = 512 * 1024      # ~0.5 MiB blocks on the per-step path

_SMEM_SPEC = pl.BlockSpec(memory_space=pltpu.MemorySpace.SMEM)


def _lane_width(n: int) -> int:
    """Widest multiple of 128 (<= 1024) that divides n."""
    for lw in range(_MAX_LANE_WIDTH, 0, -_LANES):
        if n % lw == 0:
            return lw
    raise ValueError("total element count must be a multiple of 128")


def _row_tile(rows: int, row_bytes: int, cap_bytes: int) -> int:
    """Largest row tile (multiple of 8, or the full extent) within cap_bytes."""
    if rows * row_bytes <= cap_bytes:
        return rows
    rt = max(8, (cap_bytes // row_bytes) // 8 * 8)
    return min(rt, rows)


def _vmem_limit_bytes() -> int:
    """Per-generation scoped-VMEM limit (~100 MiB on v5e/v6e, ~56 MiB on v7x)."""
    physical = 64 * 1024 * 1024          # conservative floor (v7x)
    try:
        physical = int(pltpu.get_tpu_info().vmem_capacity_bytes)
    except Exception:
        pass
    return min(physical - 8 * 1024 * 1024, 100 * 1024 * 1024)


# ----------------------------------------------------------------------------
# Pallas kernels
# ----------------------------------------------------------------------------
def _training_diffusion_kernel(coef_ref, x0_ref, noise_ref, out_ref):
    # coef_ref: SMEM (2,) = [sqrt(abar_t), sqrt(1 - abar_t)]
    out_ref[...] = coef_ref[0] * x0_ref[...] + coef_ref[1] * noise_ref[...]


def _denoise_step_kernel(coef_ref, x_ref, eps_ref, z_ref, mask_ref, xprot_ref,
                         out_ref):
    # coef_ref: SMEM (3,) = [1/sqrt(alpha_t), beta_t/sqrt(1-abar_t), sigma_t]
    x_hat = coef_ref[0] * (x_ref[...] - coef_ref[1] * eps_ref[...]) \
        + coef_ref[2] * z_ref[...]
    xprot = xprot_ref[...]
    # mask block may be (1, 1, rt, 128); broadcasts over the channel axis.
    out_ref[...] = xprot + mask_ref[...] * (x_hat - xprot)


def _make_fused_step_kernel(backbone):
    """Per-timestep denoise with the backbone computed in-kernel (no eps I/O)."""
    def kernel(coef_ref, t_ref, x_ref, z_ref, mask_ref, xprot_ref, out_ref):
        x = x_ref[...]
        eps = backbone(x, t_ref[0])
        x_hat = coef_ref[0] * (x - coef_ref[1] * eps) + coef_ref[2] * z_ref[...]
        xprot = xprot_ref[...]
        out_ref[...] = xprot + mask_ref[...] * (x_hat - xprot)
    return kernel


def _make_fused_reverse_kernel(backbone, timesteps):
    """Whole reverse loop in one kernel; x carried in the resident out block."""
    def kernel(coefs_ref, xstart_ref, xprot_ref, mask_ref, z_ref, out_ref):
        i = pl.program_id(1)                 # timestep axis: t = T - i

        @pl.when(i == 0)
        def _():
            out_ref[...] = xstart_ref[...]

        # coefs are a flat (3*T,) SMEM vector (2-D SMEM pads badly at large T).
        c0 = coefs_ref[3 * i + 0]            # 1/sqrt(alpha_t)
        c1 = coefs_ref[3 * i + 1]            # beta_t / sqrt(1 - abar_t)
        c2 = coefs_ref[3 * i + 2]            # sigma_t

        x = out_ref[...]
        eps = backbone(x, timesteps - i)
        x_hat = c0 * (x - c1 * eps) + c2 * z_ref[...]
        xprot = xprot_ref[...]
        # mask block is (B, Cm, Rp, 128); broadcasts over channels if Cm == 1.
        out_ref[...] = xprot + mask_ref[...] * (x_hat - xprot)
    return kernel


# ----------------------------------------------------------------------------
# Wrappers
# ----------------------------------------------------------------------------
@jax.jit
def training_diffusion_pallas(coefs, x0, noise):
    """coefs: f32[2]; x0, noise: f32 NCHW (any shape with size % 128 == 0)."""
    shape = x0.shape
    n = x0.size
    assert n % _LANES == 0, "total element count must be a multiple of 128"
    lw = _lane_width(n)
    rows = n // lw
    rt = _row_tile(rows, lw * 4, _TRAIN_BLOCK_BYTES)
    spec = pl.BlockSpec((rt, lw), lambda i: (i, 0))
    out = pl.pallas_call(
        _training_diffusion_kernel,
        out_shape=jax.ShapeDtypeStruct((rows, lw), x0.dtype),
        grid=(pl.cdiv(rows, rt),),
        in_specs=[_SMEM_SPEC, spec, spec],
        out_specs=spec,
        compiler_params=pltpu.CompilerParams(dimension_semantics=("parallel",)),
    )(coefs, x0.reshape(rows, lw), noise.reshape(rows, lw))
    return out.reshape(shape)


def _step_specs(C, Cm, rt):
    data_spec = pl.BlockSpec((1, C, rt, _LANES), lambda b, r: (b, 0, r, 0))
    if Cm == 1:
        mask_spec = pl.BlockSpec((1, 1, rt, _LANES), lambda b, r: (b, 0, r, 0))
    else:
        mask_spec = data_spec
    return data_spec, mask_spec


@jax.jit
def denoise_step_pallas(coefs, x, pred_noise, add_noise, mask, x_protected):
    """coefs: f32[3]; x, pred_noise, add_noise, x_protected: f32 NCHW;
    mask: (B, 1, H, W) or (B, C, H, W)."""
    B, C, H, W = x.shape
    hw = H * W
    assert hw % _LANES == 0, "H*W must be a multiple of 128"
    R = hw // _LANES
    Cm = mask.shape[1]
    assert Cm in (1, C)
    rt = _row_tile(R, C * _LANES * 4, _STEP_BLOCK_BYTES)
    data_spec, mask_spec = _step_specs(C, Cm, rt)
    out = pl.pallas_call(
        _denoise_step_kernel,
        out_shape=jax.ShapeDtypeStruct((B, C, R, _LANES), x.dtype),
        grid=(B, pl.cdiv(R, rt)),
        in_specs=[_SMEM_SPEC, data_spec, data_spec, data_spec, mask_spec,
                  data_spec],
        out_specs=data_spec,
        compiler_params=pltpu.CompilerParams(
            dimension_semantics=("parallel", "parallel")),
    )(coefs,
      x.reshape(B, C, R, _LANES),
      pred_noise.reshape(B, C, R, _LANES),
      add_noise.reshape(B, C, R, _LANES),
      mask.astype(x.dtype).reshape(B, Cm, R, _LANES),
      x_protected.reshape(B, C, R, _LANES))
    return out.reshape(B, C, H, W)


def _denoise_step_fused_pallas(backbone, coefs, t_arr, x, add_noise, mask,
                               x_protected):
    """Per-step denoise with the backbone fused in-kernel (stepwise path)."""
    B, C, H, W = x.shape
    hw = H * W
    assert hw % _LANES == 0, "H*W must be a multiple of 128"
    R = hw // _LANES
    Cm = mask.shape[1]
    assert Cm in (1, C)
    rt = _row_tile(R, C * _LANES * 4, _STEP_BLOCK_BYTES)
    data_spec, mask_spec = _step_specs(C, Cm, rt)
    out = pl.pallas_call(
        _make_fused_step_kernel(backbone),
        out_shape=jax.ShapeDtypeStruct((B, C, R, _LANES), x.dtype),
        grid=(B, pl.cdiv(R, rt)),
        in_specs=[_SMEM_SPEC, _SMEM_SPEC, data_spec, data_spec, mask_spec,
                  data_spec],
        out_specs=data_spec,
        compiler_params=pltpu.CompilerParams(
            dimension_semantics=("parallel", "parallel")),
    )(coefs, t_arr,
      x.reshape(B, C, R, _LANES),
      add_noise.reshape(B, C, R, _LANES),
      mask.astype(x.dtype).reshape(B, Cm, R, _LANES),
      x_protected.reshape(B, C, R, _LANES))
    return out.reshape(B, C, H, W)


def _fused_reverse_pallas(backbone, coefs_flat, x_init, init_noise, mask,
                          add_noise, *, num_row_splits, single_buffer_constants,
                          vmem_limit_bytes):
    """coefs_flat: f32[3*T]; x_init/init_noise: NCHW; mask: (B,Cm,H,W);
    add_noise: (T,) + NCHW."""
    B, C, H, W = x_init.shape
    T = add_noise.shape[0]
    R = (H * W) // _LANES
    P = num_row_splits
    Rp = R // P
    Cm = mask.shape[1]
    assert Cm in (1, C)

    mask = mask.astype(jnp.float32)
    # Seed protected regions with the original content.
    x_start = mask * init_noise + (1.0 - mask) * x_init

    xs4 = x_start.reshape(B, C, R, _LANES)
    xp4 = x_init.reshape(B, C, R, _LANES)
    m4 = mask.reshape(B, Cm, R, _LANES)
    zs4 = add_noise.reshape(T * B, C, R, _LANES)

    # Constant-index operands (and the resident output) only need one buffer;
    # the streamed per-step noise keeps the default double buffering.
    kw = {"pipeline_mode": pl.Buffered(1)} if single_buffer_constants else {}
    blk = (B, C, Rp, _LANES)
    const_spec = pl.BlockSpec(blk, lambda p, i: (0, 0, p, 0), **kw)
    mask_spec = pl.BlockSpec((B, Cm, Rp, _LANES),
                             lambda p, i: (0, 0, p, 0), **kw)
    out_spec = pl.BlockSpec(blk, lambda p, i: (0, 0, p, 0), **kw)
    z_spec = pl.BlockSpec(blk, lambda p, i: (i, 0, p, 0))

    out4 = pl.pallas_call(
        _make_fused_reverse_kernel(backbone, T),
        out_shape=jax.ShapeDtypeStruct((B, C, R, _LANES), x_init.dtype),
        grid=(P, T),
        in_specs=[_SMEM_SPEC, const_spec, const_spec, mask_spec, z_spec],
        out_specs=out_spec,
        compiler_params=pltpu.CompilerParams(
            dimension_semantics=("parallel", "arbitrary"),
            vmem_limit_bytes=vmem_limit_bytes),
    )(coefs_flat, xs4, xp4, m4, zs4)
    return out4.reshape(B, C, H, W)


# ----------------------------------------------------------------------------
# Scheduler (JAX/Pallas port of BaseScheduler + a concrete DDPM-style body)
# ----------------------------------------------------------------------------
class BaseSchedulerPallas:
    def __init__(self, timesteps=8, trace_interval=4,
                 beta_start=1e-4, beta_end=2e-2):
        self.timesteps = timesteps
        self.trace_interval = trace_interval
        self.trace_samples = []
        self._step_fn_cache = {}
        # Deterministic linear beta schedule (index 0 unused, t in [1, T]).
        betas = jnp.linspace(beta_start, beta_end, timesteps, dtype=jnp.float32)
        betas = jnp.concatenate([jnp.zeros((1,), jnp.float32), betas])
        alphas = 1.0 - betas
        alpha_bars = jnp.cumprod(alphas)
        self.betas, self.alphas, self.alpha_bars = betas, alphas, alpha_bars
        # Reverse-step coefficients ordered by grid step i (t = T - i):
        #   [1/sqrt(alpha_t), beta_t/sqrt(1 - abar_t), sigma_t]
        # sigma_t = sqrt(beta_t) (DDPM "large variance" choice), 0 at t == 1.
        t_idx = jnp.arange(timesteps, 0, -1)
        beta_t = betas[t_idx]
        alpha_t = alphas[t_idx]
        ab_t = alpha_bars[t_idx]
        sigma_t = jnp.where(t_idx > 1, jnp.sqrt(beta_t), 0.0)
        self.reverse_coefs = jnp.stack(
            [1.0 / jnp.sqrt(alpha_t), beta_t / jnp.sqrt(1.0 - ab_t), sigma_t],
            axis=1).astype(jnp.float32)

    # -- host-side helpers (no tensor math) -----------------------------------
    def iterate_timesteps(self):
        # TODO(synk): tqdm progress bar omitted (host-side display only).
        return range(self.timesteps, 0, -1)

    def is_saving_trace_sample(self, timestep):
        return timestep % self.trace_interval == 0 or timestep == 1

    # TODO(synk): visualize_trace_samples is matplotlib host I/O -> omitted.

    # -- tensor hot paths (Pallas) ---------------------------------------------
    def training_diffusion(self, sample, timestep, noise):
        ab = self.alpha_bars[timestep]
        coefs = jnp.stack([jnp.sqrt(ab), jnp.sqrt(1.0 - ab)]).astype(jnp.float32)
        return training_diffusion_pallas(coefs, sample, noise)

    def denoise_diffusion(self, sample, timestep, pred_noise, add_noise,
                          mask, x_protected):
        coefs = self.reverse_coefs[self.timesteps - timestep]
        return denoise_step_pallas(coefs, sample, pred_noise, add_noise,
                                   mask, x_protected)

    def _get_step_fn(self, backbone):
        fn = self._step_fn_cache.get(id(backbone))
        if fn is None:
            fn = jax.jit(functools.partial(_denoise_step_fused_pallas, backbone))
            self._step_fn_cache[id(backbone)] = fn
        return fn

    def forward(self, backbone, mask, x_init, key=None, init_noise=None,
                add_noise=None, collect_trace=False):
        """Masked reverse diffusion. mask: 1 = update, 0 = protected."""
        B, C, H, W = x_init.shape
        T = self.timesteps
        assert (H * W) % _LANES == 0, "H*W must be a multiple of 128"
        R = (H * W) // _LANES

        if init_noise is None or add_noise is None:
            assert key is not None, "need a PRNG key when noise is not provided"
            k0, k1 = jax.random.split(key)
            if init_noise is None:
                init_noise = jax.random.normal(k0, x_init.shape, jnp.float32)
            if add_noise is None:
                add_noise = jax.random.normal(k1, (T,) + x_init.shape,
                                              jnp.float32)

        mask = mask.astype(jnp.float32)
        Cm = mask.shape[1]

        # Row split: leading "parallel" axis harnesses v7x's second TensorCore
        # and halves per-core VMEM residency; negligible extra grid overhead
        # on single-core generations.
        P = 2 if (R >= 16 and R % 16 == 0) else 1
        Rp = R // P

        vmem_limit = _vmem_limit_bytes()
        slab = B * C * Rp * _LANES * 4
        mslab = B * Cm * Rp * _LANES * 4
        # Conservative accounting: assume every operand is double-buffered
        # (the no-Buffered(1) fallback), plus slack for coefs / internal scratch.
        vmem_need = 8 * slab + 2 * mslab + (2 << 20)

        if collect_trace or vmem_need > vmem_limit:
            # Per-step path (trace sampling requested or x does not fit VMEM).
            x_start = mask * init_noise + (1.0 - mask) * x_init
            return self._forward_stepwise(backbone, mask, x_init, x_start,
                                          add_noise)

        coefs_flat = self.reverse_coefs.reshape(-1)
        last_err = None
        for single_buffer in (True, False):
            run = jax.jit(functools.partial(
                _fused_reverse_pallas, backbone,
                num_row_splits=P, single_buffer_constants=single_buffer,
                vmem_limit_bytes=vmem_limit))
            try:
                out = run(coefs_flat, x_init, init_noise, mask, add_noise)
                out.block_until_ready()
                return out
            except Exception as err:  # pipeline_mode unsupported on this build
                last_err = err
        raise last_err

    def _forward_stepwise(self, backbone, mask, x_protected, x_start,
                          add_noise):
        step_fn = self._get_step_fn(backbone)
        x = x_start
        for i, t in enumerate(self.iterate_timesteps()):
            coefs = self.reverse_coefs[i]
            t_arr = jnp.full((1,), t, jnp.int32)
            x = step_fn(coefs, t_arr, x, add_noise[i], mask, x_protected)
            if self.is_saving_trace_sample(t):
                self.trace_samples.append(x)
        return x

    __call__ = forward


# ----------------------------------------------------------------------------
# Main
# ----------------------------------------------------------------------------
if __name__ == "__main__":
    key = jax.random.PRNGKey(0)
    B, C, H, W = 2, 4, 16, 16      # NCHW; H*W = 256 -> 2 rows of 128 lanes
    T = 8

    k_x, k_m, k_n, k_i, k_z = jax.random.split(key, 5)
    x0 = jax.random.normal(k_x, (B, C, H, W), jnp.float32)
    # mask: 0 = protected, 1 = unprotected; kept at (B, 1, H, W).
    mask = jax.random.bernoulli(k_m, 0.7, (B, 1, H, W)).astype(jnp.float32)
    noise = jax.random.normal(k_n, (B, C, H, W), jnp.float32)
    init_noise = jax.random.normal(k_i, (B, C, H, W), jnp.float32)
    add_noise = jax.random.normal(k_z, (T, B, C, H, W), jnp.float32)

    sched = BaseSchedulerPallas(timesteps=T, trace_interval=4)
    # TODO(synk): TripleB backbone is abstract; toy deterministic stand-in.
    backbone = lambda x, t: 0.5 * jnp.tanh(x)

    # ---- training path (forward diffusion) ----------------------------------
    x_t = sched.training_diffusion(x0, timestep=5, noise=noise)
    jax.block_until_ready(x_t)
    ab = sched.alpha_bars[5]
    x_t_ref = jnp.sqrt(ab) * x0 + jnp.sqrt(1.0 - ab) * noise
    assert x_t.shape == (B, C, H, W)
    assert bool(jnp.all(jnp.isfinite(x_t)))
    assert bool(jnp.allclose(x_t, x_t_ref, atol=1e-5, rtol=1e-5))

    # ---- single denoise step through the abstract-API method ----------------
    t_step = 3
    eps0 = backbone(x0, t_step)
    x_den = sched.denoise_diffusion(x0, t_step, eps0, noise, mask, x0)
    jax.block_until_ready(x_den)
    c = sched.reverse_coefs[T - t_step]
    x_hat_ref = c[0] * (x0 - c[1] * eps0) + c[2] * noise
    x_den_ref = x0 + mask * (x_hat_ref - x0)
    assert bool(jnp.allclose(x_den, x_den_ref, atol=1e-5, rtol=1e-5))

    # ---- sampling path: fused single-kernel reverse loop ---------------------
    x_fused = sched(backbone, mask, x0, init_noise=init_noise,
                    add_noise=add_noise)
    jax.block_until_ready(x_fused)

    # ---- sampling path: per-step kernels (backbone fused in-kernel) ----------
    x_step = sched.forward(backbone, mask, x0, init_noise=init_noise,
                           add_noise=add_noise, collect_trace=True)
    jax.block_until_ready(x_step)

    # ---- pure-JAX reference of the reverse loop ------------------------------
    x_ref = mask * init_noise + (1.0 - mask) * x0
    for i, t in enumerate(range(T, 0, -1)):
        cc = sched.reverse_coefs[i]
        e = backbone(x_ref, t)
        x_hat = cc[0] * (x_ref - cc[1] * e) + cc[2] * add_noise[i]
        x_ref = x0 + mask * (x_hat - x0)

    assert x_fused.shape == (B, C, H, W) and x_step.shape == (B, C, H, W)
    assert bool(jnp.all(jnp.isfinite(x_fused)))
    assert bool(jnp.all(jnp.isfinite(x_step)))
    assert bool(jnp.allclose(x_fused, x_ref, atol=1e-3, rtol=1e-3))
    assert bool(jnp.allclose(x_step, x_ref, atol=1e-3, rtol=1e-3))
    # Protected regions (mask == 0) must be preserved exactly.
    mask_full = jnp.broadcast_to(mask, (B, C, H, W))
    assert bool(jnp.allclose(jnp.where(mask_full == 0.0, x_fused, 0.0),
                             jnp.where(mask_full == 0.0, x0, 0.0)))
    assert bool(jnp.allclose(jnp.where(mask_full == 0.0, x_step, 0.0),
                             jnp.where(mask_full == 0.0, x0, 0.0)))
    assert len(sched.trace_samples) == 3   # t = 8, 4, 1 with trace_interval = 4

    # ---- second shape: exercises the 2-way row split (P = 2) fused path ------
    B2, C2, H2, W2 = 2, 2, 32, 64          # H*W = 2048 -> R = 16 -> P = 2
    k2 = jax.random.split(jax.random.PRNGKey(1), 4)
    x0b = jax.random.normal(k2[0], (B2, C2, H2, W2), jnp.float32)
    maskb = jax.random.bernoulli(k2[1], 0.5, (B2, 1, H2, W2)).astype(jnp.float32)
    initb = jax.random.normal(k2[2], (B2, C2, H2, W2), jnp.float32)
    addb = jax.random.normal(k2[3], (T, B2, C2, H2, W2), jnp.float32)
    x_fused2 = sched(backbone, maskb, x0b, init_noise=initb, add_noise=addb)
    jax.block_until_ready(x_fused2)
    x_ref2 = maskb * initb + (1.0 - maskb) * x0b
    for i, t in enumerate(range(T, 0, -1)):
        cc = sched.reverse_coefs[i]
        e = backbone(x_ref2, t)
        x_hat = cc[0] * (x_ref2 - cc[1] * e) + cc[2] * addb[i]
        x_ref2 = x0b + maskb * (x_hat - x0b)
    assert bool(jnp.all(jnp.isfinite(x_fused2)))
    assert bool(jnp.allclose(x_fused2, x_ref2, atol=1e-3, rtol=1e-3))

    print("KERNEL_OK")
</pallas_src>

<mosaic_0001>
module attributes {stable_mosaic.version = 11 : i64} {
  func.func @_training_diffusion_kernel(%arg0: i32, %arg1: memref<2xf32, #tpu.memory_space<smem>>, %arg2: memref<2x1024xf32, #tpu.memory_space<vmem>>, %arg3: memref<2x1024xf32, #tpu.memory_space<vmem>>, %arg4: memref<2x1024xf32, #tpu.memory_space<vmem>>) attributes {dimension_semantics = [#tpu.dimension_semantics<parallel>], iteration_bounds = array<i64: 1>, scalar_prefetch = 0 : i64, scratch_operands = 0 : i64, tpu.core_type = #tpu.core_type<tc>, window_params = [{transform_indices = @transform_0, window_bounds = array<i64: 2>}, {transform_indices = @transform_1, window_bounds = array<i64: 2, 1024>}, {transform_indices = @transform_2, window_bounds = array<i64: 2, 1024>}, {transform_indices = @transform_3, window_bounds = array<i64: 2, 1024>}]} {
    %c0 = arith.constant 0 : index
    %0 = memref.load %arg1[%c0] : memref<2xf32, #tpu.memory_space<smem>>
    %c0_0 = arith.constant 0 : index
    %c0_1 = arith.constant 0 : index
    %1 = vector.load %arg2[%c0_0, %c0_1] : memref<2x1024xf32, #tpu.memory_space<vmem>>, vector<2x1024xf32>
    %2 = vector.broadcast %0 : f32 to vector<2x1024xf32>
    %3 = arith.mulf %2, %1 : vector<2x1024xf32>
    %c1 = arith.constant 1 : index
    %4 = memref.load %arg1[%c1] : memref<2xf32, #tpu.memory_space<smem>>
    %c0_2 = arith.constant 0 : index
    %c0_3 = arith.constant 0 : index
    %5 = vector.load %arg3[%c0_2, %c0_3] : memref<2x1024xf32, #tpu.memory_space<vmem>>, vector<2x1024xf32>
    %6 = vector.broadcast %4 : f32 to vector<2x1024xf32>
    %7 = arith.mulf %6, %5 : vector<2x1024xf32>
    %8 = arith.addf %3, %7 : vector<2x1024xf32>
    %c0_4 = arith.constant 0 : index
    %c0_5 = arith.constant 0 : index
    %9 = vector.load %arg4[%c0_4, %c0_5] : memref<2x1024xf32, #tpu.memory_space<vmem>>, vector<2x1024xf32>
    tpu.vector_store %arg4[%c0_4, %c0_5], %8 {strides = array<i32>} : memref<2x1024xf32, #tpu.memory_space<vmem>>, vector<2x1024xf32>,
    return
  }
  func.func @transform_0(%arg0: i32) -> i32 {
    %c0_i32 = arith.constant 0 : i32
    %c0_i32_0 = arith.constant 0 : i32
    return %c0_i32 : i32
  }
  func.func @transform_1(%arg0: i32) -> (i32, i32) {
    %c0_i32 = arith.constant 0 : i32
    %c0_i32_0 = arith.constant 0 : i32
    return %arg0, %c0_i32 : i32, i32
  }
  func.func @transform_2(%arg0: i32) -> (i32, i32) {
    %c0_i32 = arith.constant 0 : i32
    %c0_i32_0 = arith.constant 0 : i32
    return %arg0, %c0_i32 : i32, i32
  }
  func.func @transform_3(%arg0: i32) -> (i32, i32) {
    %c0_i32 = arith.constant 0 : i32
    %c0_i32_0 = arith.constant 0 : i32
    return %arg0, %c0_i32 : i32, i32
  }
}

</mosaic_0001>

<llo_original>
// kernel: training_diffusion_pallas.1
$region0: #{training_diffusion_pallas.1}
  #allocation0 [shape = 'u32[]', space=smem, size = 0x4, offset = 0x4, fixed_abs, tag = 'smem constant byte address 0x4 - core index']
  #allocation1 [shape = 'u32[144,128]{1,0:T(1,128)}', space=vmem, size = 0x12000, scoped, tag = 'internal scratch']
  %s0 = inlined_call_operand.vmem [shape: f32[2], index: 0, kind: input, shape index: {}]
  %s1 = inlined_call_operand.vmem [shape: f32[2,1024], index: 1, kind: input, shape index: {}]
  %s2 = inlined_call_operand.vmem [shape: f32[2,1024], index: 2, kind: input, shape index: {}]
  %s3 = inlined_call_operand.vmem [shape: f32[2,1024], index: 3, kind: output, shape index: {}]
  %s4 = sld [smem:[#allocation0]]
  $region26: #{training_diffusion_pallas.1} parent=0
    _
  %s6 = ssub.s32 1, %s4
  %s7 = scalar_select 0, %s6, %s4
  $region1: #{training_diffusion_pallas.1} parent=0
    #allocation2 [shape = 'u8[512]{0}', space=smem, size = 0x200, scoped, tag = 'input window, operand 0, single buffered']
    #allocation3 [shape = 's32[1]{0}', space=sflag, size = 0x4, scoped, tag = 'scoped memory for training_diffusion_pallas.1']
    %8 = vsyncpa [#allocation3], 0
    // Predicated region
    $region2: #{training_diffusion_pallas.1} parent=1 // pred_check
      _
    $region3: #{training_diffusion_pallas.1} parent=1 // pred_check_branch
      %10 = sbr.rel (0) target = $region5
    $region4: #{training_diffusion_pallas.1} parent=1 // pred_region
      %s12 = ssub.s32 16, 16
      %13 = vsyncadd [#allocation3], %s12
      %s15 = sshll.u32 %s0, 4
      %s16 = int_to_ptr.vmem [resolvable:$true] %s15
      %18 = dma.vmem_to_smem %s16, 16, [#allocation2], [#allocation3]
    $region5: #{training_diffusion_pallas.1} parent=1 // pred_fallthru
      _
    // Predicated region
    $region6: #{training_diffusion_pallas.1} parent=1 // pred_check
      _
    $region7: #{training_diffusion_pallas.1} parent=1 // pred_check_branch
      %20 = sbr.rel (0) target = $region9
    $region8: #{training_diffusion_pallas.1} parent=1 // pred_region
      _
    $region9: #{training_diffusion_pallas.1} parent=1 // pred_fallthru
      _
    // Predicated region
    $region10: #{training_diffusion_pallas.1} parent=1 // pred_check
      _
    $region11: #{training_diffusion_pallas.1} parent=1 // pred_check_branch
      %22 = sbr.rel (0) target = $region13
    $region12: #{training_diffusion_pallas.1} parent=1 // pred_region
      _
    $region13: #{training_diffusion_pallas.1} parent=1 // pred_fallthru
      _
    // Predicated region
    $region14: #{training_diffusion_pallas.1} parent=1 // pred_check
      _
    $region15: #{training_diffusion_pallas.1} parent=1 // pred_check_branch
      %24 = sbr.rel (0) target = $region17
    $region16: #{training_diffusion_pallas.1} parent=1 // pred_region
      %25 = dma.done [#allocation3], 16
    $region17: #{training_diffusion_pallas.1} parent=1 // pred_fallthru
      _
    %26 = sfence
    %s27 = sld [smem:[#allocation2]]
    %v28 = vld [vmem:[%s1] sm:$0xff]
    %v29 = vld [vmem:[%s1 + $0x8] sm:$0xff]
    %v30 = vstv %s27
    %v31 = vmul.f32 %v30, %v28
    %v32 = vmul.f32 %v30, %v29
    %s33 = sld [smem:[#allocation2 + $0x1]]
    %v34 = vld [vmem:[%s2] sm:$0xff]
    %v35 = vld [vmem:[%s2 + $0x8] sm:$0xff]
    %v36 = vstv %s33
    %v37 = vmul.f32 %v36, %v34
    %v38 = vmul.f32 %v36, %v35
    %v39 = vadd.f32 %v31, %v37
    %v40 = vadd.f32 %v32, %v38
    %41 = vst [vmem:[%s3] sm:$0xff] %v39
    %42 = vst [vmem:[%s3 + $0x8] sm:$0xff] %v40
    // Predicated region
    $region18: #{training_diffusion_pallas.1} parent=1 // pred_check
      _
    $region19: #{training_diffusion_pallas.1} parent=1 // pred_check_branch
      %44 = sbr.rel (0) target = $region21
    $region20: #{training_diffusion_pallas.1} parent=1 // pred_region
      _
    $region21: #{training_diffusion_pallas.1} parent=1 // pred_fallthru
      _
    // Predicated region
    $region22: #{training_diffusion_pallas.1} parent=1 // pred_check
      _
    $region23: #{training_diffusion_pallas.1} parent=1 // pred_check_branch
      %46 = sbr.rel (0) target = $region25
    $region24: #{training_diffusion_pallas.1} parent=1 // pred_region
      _
    $region25: #{training_diffusion_pallas.1} parent=1 // pred_fallthru
      _
    %47 = vsyncpa [#allocation3], 1

</llo_original>
